<compile_context>
chip_gen: v5e
topology: v5e:2x2
jax: 0.10.0
libtpu: 0.0.40
codegen_flags: <defaults>
</compile_context>

<pallas_src>
import jax
import jax.numpy as jnp
from jax.experimental import pallas as pl
from jax.experimental.pallas import tpu as pltpu


def _round_up(x, m):
    return ((x + m - 1) // m) * m


def _patch_embed_kernel(p_ref, w_ref, b_ref, o_ref):
    # p_ref: [TILE_N, K_pad] compute dtype; w_ref: [K_pad, E_pad] (resident);
    # b_ref: [1, E_pad] f32 (resident); o_ref: [TILE_N, E_pad] out dtype.
    acc = jnp.dot(p_ref[...], w_ref[...], preferred_element_type=jnp.float32)
    o_ref[...] = (acc + b_ref[...]).astype(o_ref.dtype)


def patch_embedding(x, weight, bias, patch_size, *, tile_n=1024,
                    compute_dtype=jnp.bfloat16, out_dtype=None):
    """x: [B, C, H, W] (NCHW). weight: [E, C, P, P] (PyTorch conv layout). bias: [E].

    Returns [B, (H//P)*(W//P), E] in `out_dtype` (defaults to compute_dtype),
    matching nn.Conv2d(C, E, kernel_size=P, stride=P)(x).flatten(2).transpose(1, 2)
    computed with `compute_dtype` matmul inputs and f32 accumulation.
    """
    B, C, H, W = x.shape
    E = weight.shape[0]
    P = patch_size
    assert H % P == 0 and W % P == 0, "H and W must be multiples of patch_size"
    Hp, Wp = H // P, W // P
    n_patches = Hp * Wp
    N = B * n_patches
    K = C * P * P
    if out_dtype is None:
        out_dtype = compute_dtype

    # ---- wrapper-side patch extraction (convert + transpose + reshape + pad
    # fuse into a single XLA pass when this function is jitted) ---------------
    xc = x.astype(compute_dtype)
    patches = (xc.reshape(B, C, Hp, P, Wp, P)
                 .transpose(0, 2, 4, 1, 3, 5)        # (b, hp, wp, c, ph, pw)
                 .reshape(N, K))
    w_mat = weight.reshape(E, K).T.astype(compute_dtype)   # [K, E]
    b_row = bias.astype(jnp.float32).reshape(1, E)

    # ---- alignment / tiling --------------------------------------------------
    K_pad = _round_up(K, 128)                 # lane-aligned contraction dim
    E_pad = _round_up(E, 128)                 # lane-dense output (unmasked vst)
    tile_n = max(256, _round_up(int(tile_n), 256))   # validate caller value
    TILE_N = min(tile_n, _round_up(N, 256))          # don't over-tile tiny N

    # ---- generation-aware VMEM budget ---------------------------------------
    try:
        vmem_cap = int(pltpu.get_tpu_info().vmem_capacity_bytes)
    except Exception:
        vmem_cap = 64 << 20                   # conservative fallback (v7x-sized)
    vmem_budget = (vmem_cap * 4) // 5         # ~20% headroom for Mosaic scratch

    in_b = jnp.dtype(compute_dtype).itemsize
    out_b = jnp.dtype(out_dtype).itemsize

    def footprint(tn):
        body = (2 * tn * K_pad * in_b         # patch tiles   (double buffered)
                + 2 * tn * E_pad * out_b      # output tiles  (double buffered)
                + 1 * K_pad * E_pad * in_b    # resident weight (single buffer)
                + 1 * E_pad * 4)              # resident bias   (single buffer)
        return (body * 5) // 4                # single +25% margin

    while TILE_N > 256 and footprint(TILE_N) > vmem_budget:
        TILE_N //= 2
    N_pad = _round_up(N, TILE_N)
    vmem_limit = int(min(max(footprint(TILE_N), 16 << 20), vmem_budget))

    if K_pad != K:
        patches = jnp.pad(patches, ((0, 0), (0, K_pad - K)))
        w_mat = jnp.pad(w_mat, ((0, K_pad - K), (0, 0)))
    if N_pad != N:
        patches = jnp.pad(patches, ((0, N_pad - N), (0, 0)))
    if E_pad != E:
        w_mat = jnp.pad(w_mat, ((0, 0), (0, E_pad - E)))
        b_row = jnp.pad(b_row, ((0, 0), (0, E_pad - E)))

    grid = (N_pad // TILE_N,)

    def _call(single_buffer_residents):
        resident_kw = ({"pipeline_mode": pl.Buffered(1)}
                       if single_buffer_residents else {})
        return pl.pallas_call(
            _patch_embed_kernel,
            out_shape=jax.ShapeDtypeStruct((N_pad, E_pad), out_dtype),
            grid_spec=pltpu.PrefetchScalarGridSpec(
                num_scalar_prefetch=0,
                grid=grid,
                in_specs=[
                    pl.BlockSpec((TILE_N, K_pad), lambda i: (i, 0)),
                    pl.BlockSpec((K_pad, E_pad), lambda i: (0, 0),
                                 **resident_kw),        # resident weight
                    pl.BlockSpec((1, E_pad), lambda i: (0, 0),
                                 **resident_kw),        # resident bias
                ],
                out_specs=pl.BlockSpec((TILE_N, E_pad), lambda i: (i, 0)),
            ),
            compiler_params=pltpu.CompilerParams(
                # N tiles independent -> shard grid across v7x's two TCs.
                dimension_semantics=("parallel",),
                vmem_limit_bytes=vmem_limit,
            ),
        )(patches, w_mat, b_row)

    try:
        out = _call(True)
    except Exception:
        # Fallback for jax versions that reject Buffered(1) on resident blocks.
        out = _call(False)

    # Strip padding, restore [B, num_patches, E].
    return out[:N, :E].reshape(B, n_patches, E)


if __name__ == "__main__":
    # Small, module-consistent shapes: batch=2, image_depth=4, image=16x16,
    # patch_size=4 -> 16 patches, embedding_dim=32.
    B, C, H, W = 2, 4, 16, 16
    P = 4
    E = 32

    key = jax.random.PRNGKey(0)
    kx, kw, kb = jax.random.split(key, 3)

    x = jax.random.normal(kx, (B, C, H, W), dtype=jnp.float32)
    # PyTorch conv weight layout [E, C, P, P].
    weight = jax.random.normal(kw, (E, C, P, P), dtype=jnp.float32) * 0.02
    bias = jax.random.normal(kb, (E,), dtype=jnp.float32) * 0.02

    out = patch_embedding(x, weight, bias, P)
    out = jax.block_until_ready(out)
    assert out.shape == (B, (H // P) * (W // P), E)
    out_f32 = out.astype(jnp.float32)

    Hp, Wp = H // P, W // P

    # Reference 1: same bf16-input / f32-accumulate / bf16-output path in plain JAX.
    patches_ref = (x.astype(jnp.bfloat16)
                   .reshape(B, C, Hp, P, Wp, P)
                   .transpose(0, 2, 4, 1, 3, 5)
                   .reshape(B * Hp * Wp, C * P * P))
    w_ref = weight.reshape(E, C * P * P).T.astype(jnp.bfloat16)
    ref_bf16 = (jnp.dot(patches_ref, w_ref, preferred_element_type=jnp.float32)
                + bias.reshape(1, E))
    ref_bf16 = ref_bf16.astype(jnp.bfloat16).astype(jnp.float32).reshape(B, Hp * Wp, E)
    assert jnp.allclose(out_f32, ref_bf16, atol=5e-3, rtol=5e-2), (
        "max diff vs bf16 ref: %e" % float(jnp.max(jnp.abs(out_f32 - ref_bf16))))

    # Reference 2: full-f32 strided conv (module semantics; bf16 compute -> loose tol).
    ref_conv = jax.lax.conv_general_dilated(
        x, weight, window_strides=(P, P), padding="VALID",
        dimension_numbers=("NCHW", "OIHW", "NCHW"))
    ref_conv = ref_conv + bias.reshape(1, E, 1, 1)
    ref_conv = ref_conv.reshape(B, E, -1).transpose(0, 2, 1)
    assert jnp.allclose(out_f32, ref_conv, atol=3e-2, rtol=3e-2), (
        "max diff vs conv ref: %e" % float(jnp.max(jnp.abs(out_f32 - ref_conv))))

    print("KERNEL_OK")
</pallas_src>

<mosaic_0001>
module attributes {stable_mosaic.version = 11 : i64} {
  func.func @_patch_embed_kernel(%arg0: i32, %arg1: memref<256x128xbf16, #tpu.memory_space<vmem>>, %arg2: memref<128x128xbf16, #tpu.memory_space<vmem>>, %arg3: memref<1x128xf32, #tpu.memory_space<vmem>>, %arg4: memref<256x128xbf16, #tpu.memory_space<vmem>>) attributes {dimension_semantics = [#tpu.dimension_semantics<parallel>], iteration_bounds = array<i64: 1>, scalar_prefetch = 0 : i64, scratch_operands = 0 : i64, tpu.core_type = #tpu.core_type<tc>, window_params = [{transform_indices = @transform_0, window_bounds = array<i64: 256, 128>}, {pipeline_mode = #tpu.pipeline_mode<synchronous>, transform_indices = @transform_1, window_bounds = array<i64: 128, 128>}, {pipeline_mode = #tpu.pipeline_mode<synchronous>, transform_indices = @transform_2, window_bounds = array<i64: 1, 128>}, {transform_indices = @transform_3, window_bounds = array<i64: 256, 128>}]} {
    %c0 = arith.constant 0 : index
    %c0_0 = arith.constant 0 : index
    %0 = vector.load %arg1[%c0, %c0_0] : memref<256x128xbf16, #tpu.memory_space<vmem>>, vector<256x128xbf16>
    %c0_1 = arith.constant 0 : index
    %c0_2 = arith.constant 0 : index
    %1 = vector.load %arg2[%c0_1, %c0_2] : memref<128x128xbf16, #tpu.memory_space<vmem>>, vector<128x128xbf16>
    %cst = arith.constant dense<0.000000e+00> : vector<256x128xf32>
    %2 = tpu.matmul %0, %1, %cst {dimension_numbers = #tpu.dot_dimension_numbers<[1], [0], [0], [1], [0, 0, 1, 1], [], []>} : vector<256x128xbf16>, vector<128x128xbf16>, vector<256x128xf32> -> vector<256x128xf32>
    %c0_3 = arith.constant 0 : index
    %c0_4 = arith.constant 0 : index
    %3 = vector.load %arg3[%c0_3, %c0_4] : memref<1x128xf32, #tpu.memory_space<vmem>>, vector<1x128xf32>
    %4 = vector.broadcast %3 : vector<1x128xf32> to vector<256x128xf32>
    %5 = arith.addf %2, %4 : vector<256x128xf32>
    %6 = arith.truncf %5 : vector<256x128xf32> to vector<256x128xbf16>
    %c0_5 = arith.constant 0 : index
    %c0_6 = arith.constant 0 : index
    %7 = vector.load %arg4[%c0_5, %c0_6] : memref<256x128xbf16, #tpu.memory_space<vmem>>, vector<256x128xbf16>
    tpu.vector_store %arg4[%c0_5, %c0_6], %6 {strides = array<i32>} : memref<256x128xbf16, #tpu.memory_space<vmem>>, vector<256x128xbf16>,
    return
  }
  func.func @transform_0(%arg0: i32) -> (i32, i32) {
    %c0_i32 = arith.constant 0 : i32
    %c0_i32_0 = arith.constant 0 : i32
    return %arg0, %c0_i32 : i32, i32
  }
  func.func @transform_1(%arg0: i32) -> (i32, i32) {
    %c0_i32 = arith.constant 0 : i32
    %c0_i32_0 = arith.constant 0 : i32
    %c0_i32_1 = arith.constant 0 : i32
    return %c0_i32, %c0_i32_0 : i32, i32
  }
  func.func @transform_2(%arg0: i32) -> (i32, i32) {
    %c0_i32 = arith.constant 0 : i32
    %c0_i32_0 = arith.constant 0 : i32
    %c0_i32_1 = arith.constant 0 : i32
    return %c0_i32, %c0_i32_0 : i32, i32
  }
  func.func @transform_3(%arg0: i32) -> (i32, i32) {
    %c0_i32 = arith.constant 0 : i32
    %c0_i32_0 = arith.constant 0 : i32
    return %arg0, %c0_i32 : i32, i32
  }
}

module attributes {stable_mosaic.version = 11 : i64} {
  func.func @_patch_embed_kernel(%arg0: i32, %arg1: memref<256x128xbf16, #tpu.memory_space<vmem>>, %arg2: memref<128x128xbf16, #tpu.memory_space<vmem>>, %arg3: memref<1x128xf32, #tpu.memory_space<vmem>>, %arg4: memref<256x128xbf16, #tpu.memory_space<vmem>>) attributes {dimension_semantics = [#tpu.dimension_semantics<parallel>], iteration_bounds = array<i64: 1>, scalar_prefetch = 0 : i64, scratch_operands = 0 : i64, tpu.core_type = #tpu.core_type<tc>, window_params = [{transform_indices = @transform_0, window_bounds = array<i64: 256, 128>}, {pipeline_mode = #tpu.pipeline_mode<synchronous>, transform_indices = @transform_1, window_bounds = array<i64: 128, 128>}, {pipeline_mode = #tpu.pipeline_mode<synchronous>, transform_indices = @transform_2, window_bounds = array<i64: 1, 128>}, {transform_indices = @transform_3, window_bounds = array<i64: 256, 128>}]} {
    %c0 = arith.constant 0 : index
    %c0_0 = arith.constant 0 : index
    %0 = vector.load %arg1[%c0, %c0_0] : memref<256x128xbf16, #tpu.memory_space<vmem>>, vector<256x128xbf16>
    %c0_1 = arith.constant 0 : index
    %c0_2 = arith.constant 0 : index
    %1 = vector.load %arg2[%c0_1, %c0_2] : memref<128x128xbf16, #tpu.memory_space<vmem>>, vector<128x128xbf16>
    %cst = arith.constant dense<0.000000e+00> : vector<256x128xf32>
    %2 = tpu.matmul %0, %1, %cst {dimension_numbers = #tpu.dot_dimension_numbers<[1], [0], [0], [1], [0, 0, 1, 1], [], []>} : vector<256x128xbf16>, vector<128x128xbf16>, vector<256x128xf32> -> vector<256x128xf32>
    %c0_3 = arith.constant 0 : index
    %c0_4 = arith.constant 0 : index
    %3 = vector.load %arg3[%c0_3, %c0_4] : memref<1x128xf32, #tpu.memory_space<vmem>>, vector<1x128xf32>
    %4 = vector.broadcast %3 : vector<1x128xf32> to vector<256x128xf32>
    %5 = arith.addf %2, %4 : vector<256x128xf32>
    %6 = arith.truncf %5 : vector<256x128xf32> to vector<256x128xbf16>
    %c0_5 = arith.constant 0 : index
    %c0_6 = arith.constant 0 : index
    %7 = vector.load %arg4[%c0_5, %c0_6] : memref<256x128xbf16, #tpu.memory_space<vmem>>, vector<256x128xbf16>
    tpu.vector_store %arg4[%c0_5, %c0_6], %6 {strides = array<i32>} : memref<256x128xbf16, #tpu.memory_space<vmem>>, vector<256x128xbf16>,
    return
  }
  func.func @transform_0(%arg0: i32) -> (i32, i32) {
    %c0_i32 = arith.constant 0 : i32
    %c0_i32_0 = arith.constant 0 : i32
    return %arg0, %c0_i32 : i32, i32
  }
  func.func @transform_1(%arg0: i32) -> (i32, i32) {
    %c0_i32 = arith.constant 0 : i32
    %c0_i32_0 = arith.constant 0 : i32
    %c0_i32_1 = arith.constant 0 : i32
    return %c0_i32, %c0_i32_0 : i32, i32
  }
  func.func @transform_2(%arg0: i32) -> (i32, i32) {
    %c0_i32 = arith.constant 0 : i32
    %c0_i32_0 = arith.constant 0 : i32
    %c0_i32_1 = arith.constant 0 : i32
    return %c0_i32, %c0_i32_0 : i32, i32
  }
  func.func @transform_3(%arg0: i32) -> (i32, i32) {
    %c0_i32 = arith.constant 0 : i32
    %c0_i32_0 = arith.constant 0 : i32
    return %arg0, %c0_i32 : i32, i32
  }
}

</mosaic_0001>

<llo_original>
// kernel: tpu_custom_call.1
$region0: #{tpu_custom_call.1}
  #allocation0 [shape = 'u32[]', space=smem, size = 0x4, offset = 0x4, fixed_abs, tag = 'smem constant byte address 0x4 - core index']
  #allocation1 [shape = 'u32[72,128]{1,0:T(1,128)}', space=vmem, size = 0x9000, scoped, tag = 'internal scratch']
  %s0 = inlined_call_operand.hbm [shape: bf16[256,128], index: 0, kind: input, shape index: {}]
  %s1 = inlined_call_operand.hbm [shape: bf16[128,128], index: 1, kind: input, shape index: {}]
  %s2 = inlined_call_operand.vmem [shape: f32[1,128], index: 2, kind: input, shape index: {}]
  %s3 = inlined_call_operand.hbm [shape: bf16[256,128], index: 3, kind: output, shape index: {}]
  %s4 = sld [smem:[#allocation0]]
  $region30: #{tpu_custom_call.1} parent=0
    _
  %s6 = ssub.s32 1, %s4
  %s7 = scalar_select 0, %s6, %s4
  $region1: #{tpu_custom_call.1} parent=0
    #allocation2 [shape = 'u8[65536]{0}', space=vmem, size = 0x10000, scoped, tag = 'input window, operand 0, single buffered']
    #allocation3 [shape = 's32[1]{0}', space=sflag, size = 0x4, scoped, tag = 'scoped memory for tpu_custom_call.1']
    #allocation4 [shape = 's32[1]{0}', space=sflag, size = 0x4, scoped, tag = 'scoped memory for tpu_custom_call.1']
    #allocation5 [shape = 'u8[32768]{0}', space=vmem, size = 0x8000, scoped, tag = 'input window, operand 1, single buffered']
    #allocation6 [shape = 's32[1]{0}', space=sflag, size = 0x4, scoped, tag = 'scoped memory for tpu_custom_call.1']
    #allocation7 [shape = 'u8[65536]{0}', space=vmem, size = 0x10000, scoped, tag = 'output window, operand 0, single buffered']
    %8 = vsyncpa [#allocation3], 0
    %9 = vsyncpa [#allocation6], 0
    %10 = vsyncpa [#allocation4], 0
    // Predicated region
    $region2: #{tpu_custom_call.1} parent=1 // pred_check
      _
    $region3: #{tpu_custom_call.1} parent=1 // pred_check_branch
      %12 = sbr.rel (0) target = $region5
    $region4: #{tpu_custom_call.1} parent=1 // pred_region
      %14 = vsyncadd [#allocation3], 0
      %s15 = sshll.u32 %s0, 4
      %s16 = int_to_ptr.hbm [resolvable:$true] %s15
      %s17 = sshll.u32 [#allocation2], 4
      %s18 = int_to_ptr.vmem [resolvable:$true] %s17
      %23 = dma.hbm_to_vmem [thread:$0]  %s16, 2048, %s18, [#allocation3], 64, 64, 4
    $region5: #{tpu_custom_call.1} parent=1 // pred_fallthru
      _
    // Predicated region
    $region6: #{tpu_custom_call.1} parent=1 // pred_check
      _
    $region7: #{tpu_custom_call.1} parent=1 // pred_check_branch
      %25 = sbr.rel (0) target = $region9
    $region8: #{tpu_custom_call.1} parent=1 // pred_region
      %27 = vsyncadd [#allocation6], 0
      %s28 = sshll.u32 %s1, 4
      %s29 = int_to_ptr.hbm [resolvable:$true] %s28
      %s30 = sshll.u32 [#allocation5], 4
      %s31 = int_to_ptr.vmem [resolvable:$true] %s30
      %36 = dma.hbm_to_vmem [thread:$0]  %s29, 1024, %s31, [#allocation6], 64, 64, 4
    $region9: #{tpu_custom_call.1} parent=1 // pred_fallthru
      _
    // Predicated region
    $region10: #{tpu_custom_call.1} parent=1 // pred_check
      _
    $region11: #{tpu_custom_call.1} parent=1 // pred_check_branch
      %38 = sbr.rel (0) target = $region13
    $region12: #{tpu_custom_call.1} parent=1 // pred_region
      _
    $region13: #{tpu_custom_call.1} parent=1 // pred_fallthru
      _
    // Predicated region
    $region14: #{tpu_custom_call.1} parent=1 // pred_check
      _
    $region15: #{tpu_custom_call.1} parent=1 // pred_check_branch
      %40 = sbr.rel (0) target = $region17
    $region16: #{tpu_custom_call.1} parent=1 // pred_region
      %42 = dma.done [#allocation3], 2048
    $region17: #{tpu_custom_call.1} parent=1 // pred_fallthru
      _
    // Predicated region
    $region18: #{tpu_custom_call.1} parent=1 // pred_check
      _
    $region19: #{tpu_custom_call.1} parent=1 // pred_check_branch
      %44 = sbr.rel (0) target = $region21
    $region20: #{tpu_custom_call.1} parent=1 // pred_region
      %46 = dma.done [#allocation6], 1024
    $region21: #{tpu_custom_call.1} parent=1 // pred_fallthru
      _
    %v47 = vld [vmem:[#allocation2] sm:$0xf]
    %v48 = vld [vmem:[#allocation2 + $0x4] sm:$0xf]
    %v49 = vld [vmem:[#allocation2 + $0x8] sm:$0xf]
    %v50 = vld [vmem:[#allocation2 + $0xc] sm:$0xf]
    %v51 = vld [vmem:[#allocation2 + $0x10] sm:$0xf]
    %v52 = vld [vmem:[#allocation2 + $0x14] sm:$0xf]
    %v53 = vld [vmem:[#allocation2 + $0x18] sm:$0xf]
    %v54 = vld [vmem:[#allocation2 + $0x1c] sm:$0xf]
    %v55 = vld [vmem:[#allocation2 + $0x20] sm:$0xf]
    %v56 = vld [vmem:[#allocation2 + $0x24] sm:$0xf]
    %v57 = vld [vmem:[#allocation2 + $0x28] sm:$0xf]
    %v58 = vld [vmem:[#allocation2 + $0x2c] sm:$0xf]
    %v59 = vld [vmem:[#allocation2 + $0x30] sm:$0xf]
    %v60 = vld [vmem:[#allocation2 + $0x34] sm:$0xf]
    %v61 = vld [vmem:[#allocation2 + $0x38] sm:$0xf]
    %v62 = vld [vmem:[#allocation2 + $0x3c] sm:$0xf]
    %v63 = vld [vmem:[#allocation2 + $0x40] sm:$0xf]
    %v64 = vld [vmem:[#allocation2 + $0x44] sm:$0xf]
    %v65 = vld [vmem:[#allocation2 + $0x48] sm:$0xf]
    %v66 = vld [vmem:[#allocation2 + $0x4c] sm:$0xf]
    %v67 = vld [vmem:[#allocation2 + $0x50] sm:$0xf]
    %v68 = vld [vmem:[#allocation2 + $0x54] sm:$0xf]
    %v69 = vld [vmem:[#allocation2 + $0x58] sm:$0xf]
    %v70 = vld [vmem:[#allocation2 + $0x5c] sm:$0xf]
    %v71 = vld [vmem:[#allocation2 + $0x60] sm:$0xf]
    %v72 = vld [vmem:[#allocation2 + $0x64] sm:$0xf]
    %v73 = vld [vmem:[#allocation2 + $0x68] sm:$0xf]
    %v74 = vld [vmem:[#allocation2 + $0x6c] sm:$0xf]
    %v75 = vld [vmem:[#allocation2 + $0x70] sm:$0xf]
    %v76 = vld [vmem:[#allocation2 + $0x74] sm:$0xf]
    %v77 = vld [vmem:[#allocation2 + $0x78] sm:$0xf]
    %v78 = vld [vmem:[#allocation2 + $0x7c] sm:$0xf]
    %v79 = vld [vmem:[#allocation5] sm:$0xf]
    %v80 = vld [vmem:[#allocation5 + $0x4] sm:$0xf]
    %v81 = vld [vmem:[#allocation5 + $0x8] sm:$0xf]
    %v82 = vld [vmem:[#allocation5 + $0xc] sm:$0xf]
    %v83 = vld [vmem:[#allocation5 + $0x10] sm:$0xf]
    %v84 = vld [vmem:[#allocation5 + $0x14] sm:$0xf]
    %v85 = vld [vmem:[#allocation5 + $0x18] sm:$0xf]
    %v86 = vld [vmem:[#allocation5 + $0x1c] sm:$0xf]
    %v87 = vld [vmem:[#allocation5 + $0x20] sm:$0xf]
    %v88 = vld [vmem:[#allocation5 + $0x24] sm:$0xf]
    %v89 = vld [vmem:[#allocation5 + $0x28] sm:$0xf]
    %v90 = vld [vmem:[#allocation5 + $0x2c] sm:$0xf]
    %v91 = vld [vmem:[#allocation5 + $0x30] sm:$0xf]
    %v92 = vld [vmem:[#allocation5 + $0x34] sm:$0xf]
    %v93 = vld [vmem:[#allocation5 + $0x38] sm:$0xf]
    %v94 = vld [vmem:[#allocation5 + $0x3c] sm:$0xf]
    %v95 = vld [vmem:[%s2] sm:$0x1]
    %v97 = vperm.slane %v95, 0
    %v131 = vunpack.c.l.b16 %v47
    %v132 = vunpack.c.l.b16 %v48
    %v133 = vunpack.c.l.b16 %v49
    %v134 = vunpack.c.l.b16 %v50
    %v135 = vunpack.c.l.b16 %v51
    %v136 = vunpack.c.l.b16 %v52
    %v137 = vunpack.c.l.b16 %v53
    %v138 = vunpack.c.l.b16 %v54
    %v139 = vunpack.c.l.b16 %v55
    %v140 = vunpack.c.l.b16 %v56
    %v141 = vunpack.c.l.b16 %v57
    %v142 = vunpack.c.l.b16 %v58
    %v143 = vunpack.c.l.b16 %v59
    %v144 = vunpack.c.l.b16 %v60
    %v145 = vunpack.c.l.b16 %v61
    %v146 = vunpack.c.l.b16 %v62
    %v147 = vunpack.c.l.b16 %v63
    %v148 = vunpack.c.l.b16 %v64
    %v149 = vunpack.c.l.b16 %v65
    %v150 = vunpack.c.l.b16 %v66
    %v151 = vunpack.c.l.b16 %v67
    %v152 = vunpack.c.l.b16 %v68
    %v153 = vunpack.c.l.b16 %v69
    %v154 = vunpack.c.l.b16 %v70
    %v155 = vunpack.c.l.b16 %v71
    %v156 = vunpack.c.l.b16 %v72
    %v157 = vunpack.c.l.b16 %v73
    %v158 = vunpack.c.l.b16 %v74
    %v159 = vunpack.c.l.b16 %v75
    %v160 = vunpack.c.l.b16 %v76
    %v161 = vunpack.c.l.b16 %v77
    %v162 = vunpack.c.l.b16 %v78
    %v163 = vpack.c.b16 %v132, %v131
    %v164 = vpack.c.b16 %v134, %v133
    %v165 = vpack.c.b16 %v136, %v135
    %v166 = vpack.c.b16 %v138, %v137
    %v167 = vpack.c.b16 %v140, %v139
    %v168 = vpack.c.b16 %v142, %v141
    %v169 = vpack.c.b16 %v144, %v143
    %v170 = vpack.c.b16 %v146, %v145
    %v171 = vpack.c.b16 %v148, %v147
    %v172 = vpack.c.b16 %v150, %v149
    %v173 = vpack.c.b16 %v152, %v151
    %v174 = vpack.c.b16 %v154, %v153
    %v175 = vpack.c.b16 %v156, %v155
    %v176 = vpack.c.b16 %v158, %v157
    %v177 = vpack.c.b16 %v160, %v159
    %v178 = vpack.c.b16 %v162, %v161
    %v211 = vunpack.c.l.b16 %v79
    %v212 = vunpack.c.l.b16 %v80
    %v213 = vunpack.c.l.b16 %v81
    %v214 = vunpack.c.l.b16 %v82
    %v215 = vunpack.c.l.b16 %v83
    %v216 = vunpack.c.l.b16 %v84
    %v217 = vunpack.c.l.b16 %v85
    %v218 = vunpack.c.l.b16 %v86
    %v219 = vunpack.c.l.b16 %v87
    %v220 = vunpack.c.l.b16 %v88
    %v221 = vunpack.c.l.b16 %v89
    %v222 = vunpack.c.l.b16 %v90
    %v223 = vunpack.c.l.b16 %v91
    %v224 = vunpack.c.l.b16 %v92
    %v225 = vunpack.c.l.b16 %v93
    %v226 = vunpack.c.l.b16 %v94
    %v227 = vpack.c.b16 %v212, %v211
    %v228 = vpack.c.b16 %v214, %v213
    %v229 = vpack.c.b16 %v216, %v215
    %v230 = vpack.c.b16 %v218, %v217
    %v231 = vpack.c.b16 %v220, %v219
    %v232 = vpack.c.b16 %v222, %v221
    %v233 = vpack.c.b16 %v224, %v223
    %v234 = vpack.c.b16 %v226, %v225
    %243 = vmatpush.bf16.msra.mxu0 %v234
    %244 = vmatpush.bf16.msra.mxu0 %v233
    %245 = vmatpush.bf16.msra.mxu0 %v232
    %246 = vmatpush.bf16.msra.mxu0 %v231
    %247 = vmatpush.bf16.msra.mxu0 %v230
    %248 = vmatpush.bf16.msra.mxu0 %v229
    %249 = vmatpush.bf16.msra.mxu0 %v228
    %250 = vmatpush.bf16.msra.mxu0 %v227
    %251 = vmatmul.bf16.gmra.mxu0 %v163
    %v252 = vpop.f32.mrf.mxu0
    %v253 = vadd.f32 %v97, %v252
    %v254 = vpop.f32.mrf.mxu0
    %v255 = vadd.f32 %v97, %v254
    %256 = vmatmul.bf16.gmra.mxu0 %v164
    %v257 = vpop.f32.mrf.mxu0
    %v258 = vadd.f32 %v97, %v257
    %v259 = vpop.f32.mrf.mxu0
    %v260 = vadd.f32 %v97, %v259
    %261 = vmatmul.bf16.gmra.mxu0 %v165
    %v262 = vpop.f32.mrf.mxu0
    %v263 = vadd.f32 %v97, %v262
    %v264 = vpop.f32.mrf.mxu0
    %v265 = vadd.f32 %v97, %v264
    %266 = vmatmul.bf16.gmra.mxu0 %v166
    %v267 = vpop.f32.mrf.mxu0
    %v268 = vadd.f32 %v97, %v267
    %v269 = vpop.f32.mrf.mxu0
    %v270 = vadd.f32 %v97, %v269
    %271 = vmatmul.bf16.gmra.mxu0 %v167
    %v272 = vpop.f32.mrf.mxu0
    %v273 = vadd.f32 %v97, %v272
    %v274 = vpop.f32.mrf.mxu0
    %v275 = vadd.f32 %v97, %v274
    %276 = vmatmul.bf16.gmra.mxu0 %v168
    %v277 = vpop.f32.mrf.mxu0
    %v278 = vadd.f32 %v97, %v277
    %v279 = vpop.f32.mrf.mxu0
    %v280 = vadd.f32 %v97, %v279
    %281 = vmatmul.bf16.gmra.mxu0 %v169
    %v282 = vpop.f32.mrf.mxu0
    %v283 = vadd.f32 %v97, %v282
    %v284 = vpop.f32.mrf.mxu0
    %v285 = vadd.f32 %v97, %v284
    %286 = vmatmul.bf16.gmra.mxu0 %v170
    %v287 = vpop.f32.mrf.mxu0
    %v288 = vadd.f32 %v97, %v287
    %v289 = vpop.f32.mrf.mxu0
    %v290 = vadd.f32 %v97, %v289
    %291 = vmatmul.bf16.gmra.mxu0 %v171
    %v292 = vpop.f32.mrf.mxu0
    %v293 = vadd.f32 %v97, %v292
    %v294 = vpop.f32.mrf.mxu0
    %v295 = vadd.f32 %v97, %v294
    %296 = vmatmul.bf16.gmra.mxu0 %v172
    %v297 = vpop.f32.mrf.mxu0
    %v298 = vadd.f32 %v97, %v297
    %v299 = vpop.f32.mrf.mxu0
    %v300 = vadd.f32 %v97, %v299
    %301 = vmatmul.bf16.gmra.mxu0 %v173
    %v302 = vpop.f32.mrf.mxu0
    %v303 = vadd.f32 %v97, %v302
    %v304 = vpop.f32.mrf.mxu0
    %v305 = vadd.f32 %v97, %v304
    %306 = vmatmul.bf16.gmra.mxu0 %v174
    %v307 = vpop.f32.mrf.mxu0
    %v308 = vadd.f32 %v97, %v307
    %v309 = vpop.f32.mrf.mxu0
    %v310 = vadd.f32 %v97, %v309
    %311 = vmatmul.bf16.gmra.mxu0 %v175
    %v312 = vpop.f32.mrf.mxu0
    %v313 = vadd.f32 %v97, %v312
    %v314 = vpop.f32.mrf.mxu0
    %v315 = vadd.f32 %v97, %v314
    %316 = vmatmul.bf16.gmra.mxu0 %v176
    %v317 = vpop.f32.mrf.mxu0
    %v318 = vadd.f32 %v97, %v317
    %v319 = vpop.f32.mrf.mxu0
    %v320 = vadd.f32 %v97, %v319
    %321 = vmatmul.bf16.gmra.mxu0 %v177
    %v322 = vpop.f32.mrf.mxu0
    %v323 = vadd.f32 %v97, %v322
    %v324 = vpop.f32.mrf.mxu0
    %v325 = vadd.f32 %v97, %v324
    %326 = vmatmul.bf16.gmra.mxu0 %v178
    %v327 = vpop.f32.mrf.mxu0
    %v328 = vadd.f32 %v97, %v327
    %v329 = vpop.f32.mrf.mxu0
    %v330 = vadd.f32 %v97, %v329
    %331 = vdwg.mxu0
    %v332 = vpack.c.bf16 %v253, %v253
    %v333 = vpack.c.bf16 %v255, %v255
    %v334 = vpack.c.bf16 %v258, %v258
    %v335 = vpack.c.bf16 %v260, %v260
    %v336 = vpack.c.bf16 %v263, %v263
    %v337 = vpack.c.bf16 %v265, %v265
    %v338 = vpack.c.bf16 %v268, %v268
    %v339 = vpack.c.bf16 %v270, %v270
    %v340 = vpack.c.bf16 %v273, %v273
    %v341 = vpack.c.bf16 %v275, %v275
    %v342 = vpack.c.bf16 %v278, %v278
    %v343 = vpack.c.bf16 %v280, %v280
    %v344 = vpack.c.bf16 %v283, %v283
    %v345 = vpack.c.bf16 %v285, %v285
    %v346 = vpack.c.bf16 %v288, %v288
    %v347 = vpack.c.bf16 %v290, %v290
    %v348 = vpack.c.bf16 %v293, %v293
    %v349 = vpack.c.bf16 %v295, %v295
    %v350 = vpack.c.bf16 %v298, %v298
    %v351 = vpack.c.bf16 %v300, %v300
    %v352 = vpack.c.bf16 %v303, %v303
    %v353 = vpack.c.bf16 %v305, %v305
    %v354 = vpack.c.bf16 %v308, %v308
    %v355 = vpack.c.bf16 %v310, %v310
    %v356 = vpack.c.bf16 %v313, %v313
    %v357 = vpack.c.bf16 %v315, %v315
    %v358 = vpack.c.bf16 %v318, %v318
    %v359 = vpack.c.bf16 %v320, %v320
    %v360 = vpack.c.bf16 %v323, %v323
    %v361 = vpack.c.bf16 %v325, %v325
    %v362 = vpack.c.bf16 %v328, %v328
    %v363 = vpack.c.bf16 %v330, %v330
    %364 = vst [vmem:[#allocation7] sm:$0xf] %v332
    %365 = vst [vmem:[#allocation7 + $0x4] sm:$0xf] %v333
    %366 = vst [vmem:[#allocation7 + $0x8] sm:$0xf] %v334
    %367 = vst [vmem:[#allocation7 + $0xc] sm:$0xf] %v335
    %368 = vst [vmem:[#allocation7 + $0x10] sm:$0xf] %v336
    %369 = vst [vmem:[#allocation7 + $0x14] sm:$0xf] %v337
    %370 = vst [vmem:[#allocation7 + $0x18] sm:$0xf] %v338
    %371 = vst [vmem:[#allocation7 + $0x1c] sm:$0xf] %v339
    %372 = vst [vmem:[#allocation7 + $0x20] sm:$0xf] %v340
    %373 = vst [vmem:[#allocation7 + $0x24] sm:$0xf] %v341
    %374 = vst [vmem:[#allocation7 + $0x28] sm:$0xf] %v342
    %375 = vst [vmem:[#allocation7 + $0x2c] sm:$0xf] %v343
    %376 = vst [vmem:[#allocation7 + $0x30] sm:$0xf] %v344
    %377 = vst [vmem:[#allocation7 + $0x34] sm:$0xf] %v345
    %378 = vst [vmem:[#allocation7 + $0x38] sm:$0xf] %v346
    %379 = vst [vmem:[#allocation7 + $0x3c] sm:$0xf] %v347
    %380 = vst [vmem:[#allocation7 + $0x40] sm:$0xf] %v348
    %381 = vst [vmem:[#allocation7 + $0x44] sm:$0xf] %v349
    %382 = vst [vmem:[#allocation7 + $0x48] sm:$0xf] %v350
    %383 = vst [vmem:[#allocation7 + $0x4c] sm:$0xf] %v351
    %384 = vst [vmem:[#allocation7 + $0x50] sm:$0xf] %v352
    %385 = vst [vmem:[#allocation7 + $0x54] sm:$0xf] %v353
    %386 = vst [vmem:[#allocation7 + $0x58] sm:$0xf] %v354
    %387 = vst [vmem:[#allocation7 + $0x5c] sm:$0xf] %v355
    %388 = vst [vmem:[#allocation7 + $0x60] sm:$0xf] %v356
    %389 = vst [vmem:[#allocation7 + $0x64] sm:$0xf] %v357
    %390 = vst [vmem:[#allocation7 + $0x68] sm:$0xf] %v358
    %391 = vst [vmem:[#allocation7 + $0x6c] sm:$0xf] %v359
    %392 = vst [vmem:[#allocation7 + $0x70] sm:$0xf] %v360
    %393 = vst [vmem:[#allocation7 + $0x74] sm:$0xf] %v361
    %394 = vst [vmem:[#allocation7 + $0x78] sm:$0xf] %v362
    %395 = vst [vmem:[#allocation7 + $0x7c] sm:$0xf] %v363
    // Predicated region
    $region22: #{tpu_custom_call.1} parent=1 // pred_check
      _
    $region23: #{tpu_custom_call.1} parent=1 // pred_check_branch
      %397 = sbr.rel (0) target = $region25
    $region24: #{tpu_custom_call.1} parent=1 // pred_region
      %399 = vsyncadd [#allocation4], 0
      %s400 = sshll.u32 [#allocation7], 4
      %s401 = int_to_ptr.vmem [resolvable:$true] %s400
      %s402 = sshll.u32 %s3, 4
      %s403 = int_to_ptr.hbm [resolvable:$true] %s402
      %408 = dma.vmem_to_hbm [thread:$0]  %s401, 2048, %s403, [#allocation4], 64, 64, 4
    $region25: #{tpu_custom_call.1} parent=1 // pred_fallthru
      _
    // Predicated region
    $region26: #{tpu_custom_call.1} parent=1 // pred_check
      _
    $region27: #{tpu_custom_call.1} parent=1 // pred_check_branch
      %410 = sbr.rel (0) target = $region29
    $region28: #{tpu_custom_call.1} parent=1 // pred_region
      %412 = dma.done [#allocation4], 2048
    $region29: #{tpu_custom_call.1} parent=1 // pred_fallthru
      _
    %413 = vsyncpa [#allocation3], 1
    %414 = vsyncpa [#allocation6], 1
    %415 = vsyncpa [#allocation4], 1

// kernel: tpu_custom_call.1
$region0: #{tpu_custom_call.1}
  #allocation0 [shape = 'u32[]', space=smem, size = 0x4, offset = 0x4, fixed_abs, tag = 'smem constant byte address 0x4 - core index']
  #allocation1 [shape = 'u32[72,128]{1,0:T(1,128)}', space=vmem, size = 0x9000, scoped, tag = 'internal scratch']
  %s0 = inlined_call_operand.hbm [shape: bf16[256,128], index: 0, kind: input, shape index: {}]
  %s1 = inlined_call_operand.hbm [shape: bf16[128,128], index: 1, kind: input, shape index: {}]
  %s2 = inlined_call_operand.vmem [shape: f32[1,128], index: 2, kind: input, shape index: {}]
  %s3 = inlined_call_operand.hbm [shape: bf16[256,128], index: 3, kind: output, shape index: {}]
  %s4 = sld [smem:[#allocation0]]
  $region30: #{tpu_custom_call.1} parent=0
    _
  %s6 = ssub.s32 1, %s4
  %s7 = scalar_select 0, %s6, %s4
  $region1: #{tpu_custom_call.1} parent=0
    #allocation2 [shape = 'u8[65536]{0}', space=vmem, size = 0x10000, scoped, tag = 'input window, operand 0, single buffered']
    #allocation3 [shape = 's32[1]{0}', space=sflag, size = 0x4, scoped, tag = 'scoped memory for tpu_custom_call.1']
    #allocation4 [shape = 's32[1]{0}', space=sflag, size = 0x4, scoped, tag = 'scoped memory for tpu_custom_call.1']
    #allocation5 [shape = 'u8[32768]{0}', space=vmem, size = 0x8000, scoped, tag = 'input window, operand 1, single buffered']
    #allocation6 [shape = 's32[1]{0}', space=sflag, size = 0x4, scoped, tag = 'scoped memory for tpu_custom_call.1']
    #allocation7 [shape = 'u8[65536]{0}', space=vmem, size = 0x10000, scoped, tag = 'output window, operand 0, single buffered']
    %8 = vsyncpa [#allocation3], 0
    %9 = vsyncpa [#allocation6], 0
    %10 = vsyncpa [#allocation4], 0
    // Predicated region
    $region2: #{tpu_custom_call.1} parent=1 // pred_check
      _
    $region3: #{tpu_custom_call.1} parent=1 // pred_check_branch
      %12 = sbr.rel (0) target = $region5
    $region4: #{tpu_custom_call.1} parent=1 // pred_region
      %14 = vsyncadd [#allocation3], 0
      %s15 = sshll.u32 %s0, 4
      %s16 = int_to_ptr.hbm [resolvable:$true] %s15
      %s17 = sshll.u32 [#allocation2], 4
      %s18 = int_to_ptr.vmem [resolvable:$true] %s17
      %23 = dma.hbm_to_vmem [thread:$0]  %s16, 2048, %s18, [#allocation3], 64, 64, 4
    $region5: #{tpu_custom_call.1} parent=1 // pred_fallthru
      _
    // Predicated region
    $region6: #{tpu_custom_call.1} parent=1 // pred_check
      _
    $region7: #{tpu_custom_call.1} parent=1 // pred_check_branch
      %25 = sbr.rel (0) target = $region9
    $region8: #{tpu_custom_call.1} parent=1 // pred_region
      %27 = vsyncadd [#allocation6], 0
      %s28 = sshll.u32 %s1, 4
      %s29 = int_to_ptr.hbm [resolvable:$true] %s28
      %s30 = sshll.u32 [#allocation5], 4
      %s31 = int_to_ptr.vmem [resolvable:$true] %s30
      %36 = dma.hbm_to_vmem [thread:$0]  %s29, 1024, %s31, [#allocation6], 64, 64, 4
    $region9: #{tpu_custom_call.1} parent=1 // pred_fallthru
      _
    // Predicated region
    $region10: #{tpu_custom_call.1} parent=1 // pred_check
      _
    $region11: #{tpu_custom_call.1} parent=1 // pred_check_branch
      %38 = sbr.rel (0) target = $region13
    $region12: #{tpu_custom_call.1} parent=1 // pred_region
      _
    $region13: #{tpu_custom_call.1} parent=1 // pred_fallthru
      _
    // Predicated region
    $region14: #{tpu_custom_call.1} parent=1 // pred_check
      _
    $region15: #{tpu_custom_call.1} parent=1 // pred_check_branch
      %40 = sbr.rel (0) target = $region17
    $region16: #{tpu_custom_call.1} parent=1 // pred_region
      %42 = dma.done [#allocation3], 2048
    $region17: #{tpu_custom_call.1} parent=1 // pred_fallthru
      _
    // Predicated region
    $region18: #{tpu_custom_call.1} parent=1 // pred_check
      _
    $region19: #{tpu_custom_call.1} parent=1 // pred_check_branch
      %44 = sbr.rel (0) target = $region21
    $region20: #{tpu_custom_call.1} parent=1 // pred_region
      %46 = dma.done [#allocation6], 1024
    $region21: #{tpu_custom_call.1} parent=1 // pred_fallthru
      _
    %v47 = vld [vmem:[#allocation2] sm:$0xf]
    %v48 = vld [vmem:[#allocation2 + $0x4] sm:$0xf]
    %v49 = vld [vmem:[#allocation2 + $0x8] sm:$0xf]
    %v50 = vld [vmem:[#allocation2 + $0xc] sm:$0xf]
    %v51 = vld [vmem:[#allocation2 + $0x10] sm:$0xf]
    %v52 = vld [vmem:[#allocation2 + $0x14] sm:$0xf]
    %v53 = vld [vmem:[#allocation2 + $0x18] sm:$0xf]
    %v54 = vld [vmem:[#allocation2 + $0x1c] sm:$0xf]
    %v55 = vld [vmem:[#allocation2 + $0x20] sm:$0xf]
    %v56 = vld [vmem:[#allocation2 + $0x24] sm:$0xf]
    %v57 = vld [vmem:[#allocation2 + $0x28] sm:$0xf]
    %v58 = vld [vmem:[#allocation2 + $0x2c] sm:$0xf]
    %v59 = vld [vmem:[#allocation2 + $0x30] sm:$0xf]
    %v60 = vld [vmem:[#allocation2 + $0x34] sm:$0xf]
    %v61 = vld [vmem:[#allocation2 + $0x38] sm:$0xf]
    %v62 = vld [vmem:[#allocation2 + $0x3c] sm:$0xf]
    %v63 = vld [vmem:[#allocation2 + $0x40] sm:$0xf]
    %v64 = vld [vmem:[#allocation2 + $0x44] sm:$0xf]
    %v65 = vld [vmem:[#allocation2 + $0x48] sm:$0xf]
    %v66 = vld [vmem:[#allocation2 + $0x4c] sm:$0xf]
    %v67 = vld [vmem:[#allocation2 + $0x50] sm:$0xf]
    %v68 = vld [vmem:[#allocation2 + $0x54] sm:$0xf]
    %v69 = vld [vmem:[#allocation2 + $0x58] sm:$0xf]
    %v70 = vld [vmem:[#allocation2 + $0x5c] sm:$0xf]
    %v71 = vld [vmem:[#allocation2 + $0x60] sm:$0xf]
    %v72 = vld [vmem:[#allocation2 + $0x64] sm:$0xf]
    %v73 = vld [vmem:[#allocation2 + $0x68] sm:$0xf]
    %v74 = vld [vmem:[#allocation2 + $0x6c] sm:$0xf]
    %v75 = vld [vmem:[#allocation2 + $0x70] sm:$0xf]
    %v76 = vld [vmem:[#allocation2 + $0x74] sm:$0xf]
    %v77 = vld [vmem:[#allocation2 + $0x78] sm:$0xf]
    %v78 = vld [vmem:[#allocation2 + $0x7c] sm:$0xf]
    %v79 = vld [vmem:[#allocation5] sm:$0xf]
    %v80 = vld [vmem:[#allocation5 + $0x4] sm:$0xf]
    %v81 = vld [vmem:[#allocation5 + $0x8] sm:$0xf]
    %v82 = vld [vmem:[#allocation5 + $0xc] sm:$0xf]
    %v83 = vld [vmem:[#allocation5 + $0x10] sm:$0xf]
    %v84 = vld [vmem:[#allocation5 + $0x14] sm:$0xf]
    %v85 = vld [vmem:[#allocation5 + $0x18] sm:$0xf]
    %v86 = vld [vmem:[#allocation5 + $0x1c] sm:$0xf]
    %v87 = vld [vmem:[#allocation5 + $0x20] sm:$0xf]
    %v88 = vld [vmem:[#allocation5 + $0x24] sm:$0xf]
    %v89 = vld [vmem:[#allocation5 + $0x28] sm:$0xf]
    %v90 = vld [vmem:[#allocation5 + $0x2c] sm:$0xf]
    %v91 = vld [vmem:[#allocation5 + $0x30] sm:$0xf]
    %v92 = vld [vmem:[#allocation5 + $0x34] sm:$0xf]
    %v93 = vld [vmem:[#allocation5 + $0x38] sm:$0xf]
    %v94 = vld [vmem:[#allocation5 + $0x3c] sm:$0xf]
    %v95 = vld [vmem:[%s2] sm:$0x1]
    %v97 = vperm.slane %v95, 0
    %v131 = vunpack.c.l.b16 %v47
    %v132 = vunpack.c.l.b16 %v48
    %v133 = vunpack.c.l.b16 %v49
    %v134 = vunpack.c.l.b16 %v50
    %v135 = vunpack.c.l.b16 %v51
    %v136 = vunpack.c.l.b16 %v52
    %v137 = vunpack.c.l.b16 %v53
    %v138 = vunpack.c.l.b16 %v54
    %v139 = vunpack.c.l.b16 %v55
    %v140 = vunpack.c.l.b16 %v56
    %v141 = vunpack.c.l.b16 %v57
    %v142 = vunpack.c.l.b16 %v58
    %v143 = vunpack.c.l.b16 %v59
    %v144 = vunpack.c.l.b16 %v60
    %v145 = vunpack.c.l.b16 %v61
    %v146 = vunpack.c.l.b16 %v62
    %v147 = vunpack.c.l.b16 %v63
    %v148 = vunpack.c.l.b16 %v64
    %v149 = vunpack.c.l.b16 %v65
    %v150 = vunpack.c.l.b16 %v66
    %v151 = vunpack.c.l.b16 %v67
    %v152 = vunpack.c.l.b16 %v68
    %v153 = vunpack.c.l.b16 %v69
    %v154 = vunpack.c.l.b16 %v70
    %v155 = vunpack.c.l.b16 %v71
    %v156 = vunpack.c.l.b16 %v72
    %v157 = vunpack.c.l.b16 %v73
    %v158 = vunpack.c.l.b16 %v74
    %v159 = vunpack.c.l.b16 %v75
    %v160 = vunpack.c.l.b16 %v76
    %v161 = vunpack.c.l.b16 %v77
    %v162 = vunpack.c.l.b16 %v78
    %v163 = vpack.c.b16 %v132, %v131
    %v164 = vpack.c.b16 %v134, %v133
    %v165 = vpack.c.b16 %v136, %v135
    %v166 = vpack.c.b16 %v138, %v137
    %v167 = vpack.c.b16 %v140, %v139
    %v168 = vpack.c.b16 %v142, %v141
    %v169 = vpack.c.b16 %v144, %v143
    %v170 = vpack.c.b16 %v146, %v145
    %v171 = vpack.c.b16 %v148, %v147
    %v172 = vpack.c.b16 %v150, %v149
    %v173 = vpack.c.b16 %v152, %v151
    %v174 = vpack.c.b16 %v154, %v153
    %v175 = vpack.c.b16 %v156, %v155
    %v176 = vpack.c.b16 %v158, %v157
    %v177 = vpack.c.b16 %v160, %v159
    %v178 = vpack.c.b16 %v162, %v161
    %v211 = vunpack.c.l.b16 %v79
    %v212 = vunpack.c.l.b16 %v80
    %v213 = vunpack.c.l.b16 %v81
    %v214 = vunpack.c.l.b16 %v82
    %v215 = vunpack.c.l.b16 %v83
    %v216 = vunpack.c.l.b16 %v84
    %v217 = vunpack.c.l.b16 %v85
    %v218 = vunpack.c.l.b16 %v86
    %v219 = vunpack.c.l.b16 %v87
    %v220 = vunpack.c.l.b16 %v88
    %v221 = vunpack.c.l.b16 %v89
    %v222 = vunpack.c.l.b16 %v90
    %v223 = vunpack.c.l.b16 %v91
    %v224 = vunpack.c.l.b16 %v92
    %v225 = vunpack.c.l.b16 %v93
    %v226 = vunpack.c.l.b16 %v94
    %v227 = vpack.c.b16 %v212, %v211
    %v228 = vpack.c.b16 %v214, %v213
    %v229 = vpack.c.b16 %v216, %v215
    %v230 = vpack.c.b16 %v218, %v217
    %v231 = vpack.c.b16 %v220, %v219
    %v232 = vpack.c.b16 %v222, %v221
    %v233 = vpack.c.b16 %v224, %v223
    %v234 = vpack.c.b16 %v226, %v225
    %243 = vmatpush.bf16.msra.mxu0 %v234
    %244 = vmatpush.bf16.msra.mxu0 %v233
    %245 = vmatpush.bf16.msra.mxu0 %v232
    %246 = vmatpush.bf16.msra.mxu0 %v231
    %247 = vmatpush.bf16.msra.mxu0 %v230
    %248 = vmatpush.bf16.msra.mxu0 %v229
    %249 = vmatpush.bf16.msra.mxu0 %v228
    %250 = vmatpush.bf16.msra.mxu0 %v227
    %251 = vmatmul.bf16.gmra.mxu0 %v163
    %v252 = vpop.f32.mrf.mxu0
    %v253 = vadd.f32 %v97, %v252
    %v254 = vpop.f32.mrf.mxu0
    %v255 = vadd.f32 %v97, %v254
    %256 = vmatmul.bf16.gmra.mxu0 %v164
    %v257 = vpop.f32.mrf.mxu0
    %v258 = vadd.f32 %v97, %v257
    %v259 = vpop.f32.mrf.mxu0
    %v260 = vadd.f32 %v97, %v259
    %261 = vmatmul.bf16.gmra.mxu0 %v165
    %v262 = vpop.f32.mrf.mxu0
    %v263 = vadd.f32 %v97, %v262
    %v264 = vpop.f32.mrf.mxu0
    %v265 = vadd.f32 %v97, %v264
    %266 = vmatmul.bf16.gmra.mxu0 %v166
    %v267 = vpop.f32.mrf.mxu0
    %v268 = vadd.f32 %v97, %v267
    %v269 = vpop.f32.mrf.mxu0
    %v270 = vadd.f32 %v97, %v269
    %271 = vmatmul.bf16.gmra.mxu0 %v167
    %v272 = vpop.f32.mrf.mxu0
    %v273 = vadd.f32 %v97, %v272
    %v274 = vpop.f32.mrf.mxu0
    %v275 = vadd.f32 %v97, %v274
    %276 = vmatmul.bf16.gmra.mxu0 %v168
    %v277 = vpop.f32.mrf.mxu0
    %v278 = vadd.f32 %v97, %v277
    %v279 = vpop.f32.mrf.mxu0
    %v280 = vadd.f32 %v97, %v279
    %281 = vmatmul.bf16.gmra.mxu0 %v169
    %v282 = vpop.f32.mrf.mxu0
    %v283 = vadd.f32 %v97, %v282
    %v284 = vpop.f32.mrf.mxu0
    %v285 = vadd.f32 %v97, %v284
    %286 = vmatmul.bf16.gmra.mxu0 %v170
    %v287 = vpop.f32.mrf.mxu0
    %v288 = vadd.f32 %v97, %v287
    %v289 = vpop.f32.mrf.mxu0
    %v290 = vadd.f32 %v97, %v289
    %291 = vmatmul.bf16.gmra.mxu0 %v171
    %v292 = vpop.f32.mrf.mxu0
    %v293 = vadd.f32 %v97, %v292
    %v294 = vpop.f32.mrf.mxu0
    %v295 = vadd.f32 %v97, %v294
    %296 = vmatmul.bf16.gmra.mxu0 %v172
    %v297 = vpop.f32.mrf.mxu0
    %v298 = vadd.f32 %v97, %v297
    %v299 = vpop.f32.mrf.mxu0
    %v300 = vadd.f32 %v97, %v299
    %301 = vmatmul.bf16.gmra.mxu0 %v173
    %v302 = vpop.f32.mrf.mxu0
    %v303 = vadd.f32 %v97, %v302
    %v304 = vpop.f32.mrf.mxu0
    %v305 = vadd.f32 %v97, %v304
    %306 = vmatmul.bf16.gmra.mxu0 %v174
    %v307 = vpop.f32.mrf.mxu0
    %v308 = vadd.f32 %v97, %v307
    %v309 = vpop.f32.mrf.mxu0
    %v310 = vadd.f32 %v97, %v309
    %311 = vmatmul.bf16.gmra.mxu0 %v175
    %v312 = vpop.f32.mrf.mxu0
    %v313 = vadd.f32 %v97, %v312
    %v314 = vpop.f32.mrf.mxu0
    %v315 = vadd.f32 %v97, %v314
    %316 = vmatmul.bf16.gmra.mxu0 %v176
    %v317 = vpop.f32.mrf.mxu0
    %v318 = vadd.f32 %v97, %v317
    %v319 = vpop.f32.mrf.mxu0
    %v320 = vadd.f32 %v97, %v319
    %321 = vmatmul.bf16.gmra.mxu0 %v177
    %v322 = vpop.f32.mrf.mxu0
    %v323 = vadd.f32 %v97, %v322
    %v324 = vpop.f32.mrf.mxu0
    %v325 = vadd.f32 %v97, %v324
    %326 = vmatmul.bf16.gmra.mxu0 %v178
    %v327 = vpop.f32.mrf.mxu0
    %v328 = vadd.f32 %v97, %v327
    %v329 = vpop.f32.mrf.mxu0
    %v330 = vadd.f32 %v97, %v329
    %331 = vdwg.mxu0
    %v332 = vpack.c.bf16 %v253, %v253
    %v333 = vpack.c.bf16 %v255, %v255
    %v334 = vpack.c.bf16 %v258, %v258
    %v335 = vpack.c.bf16 %v260, %v260
    %v336 = vpack.c.bf16 %v263, %v263
    %v337 = vpack.c.bf16 %v265, %v265
    %v338 = vpack.c.bf16 %v268, %v268
    %v339 = vpack.c.bf16 %v270, %v270
    %v340 = vpack.c.bf16 %v273, %v273
    %v341 = vpack.c.bf16 %v275, %v275
    %v342 = vpack.c.bf16 %v278, %v278
    %v343 = vpack.c.bf16 %v280, %v280
    %v344 = vpack.c.bf16 %v283, %v283
    %v345 = vpack.c.bf16 %v285, %v285
    %v346 = vpack.c.bf16 %v288, %v288
    %v347 = vpack.c.bf16 %v290, %v290
    %v348 = vpack.c.bf16 %v293, %v293
    %v349 = vpack.c.bf16 %v295, %v295
    %v350 = vpack.c.bf16 %v298, %v298
    %v351 = vpack.c.bf16 %v300, %v300
    %v352 = vpack.c.bf16 %v303, %v303
    %v353 = vpack.c.bf16 %v305, %v305
    %v354 = vpack.c.bf16 %v308, %v308
    %v355 = vpack.c.bf16 %v310, %v310
    %v356 = vpack.c.bf16 %v313, %v313
    %v357 = vpack.c.bf16 %v315, %v315
    %v358 = vpack.c.bf16 %v318, %v318
    %v359 = vpack.c.bf16 %v320, %v320
    %v360 = vpack.c.bf16 %v323, %v323
    %v361 = vpack.c.bf16 %v325, %v325
    %v362 = vpack.c.bf16 %v328, %v328
    %v363 = vpack.c.bf16 %v330, %v330
    %364 = vst [vmem:[#allocation7] sm:$0xf] %v332
    %365 = vst [vmem:[#allocation7 + $0x4] sm:$0xf] %v333
    %366 = vst [vmem:[#allocation7 + $0x8] sm:$0xf] %v334
    %367 = vst [vmem:[#allocation7 + $0xc] sm:$0xf] %v335
    %368 = vst [vmem:[#allocation7 + $0x10] sm:$0xf] %v336
    %369 = vst [vmem:[#allocation7 + $0x14] sm:$0xf] %v337
    %370 = vst [vmem:[#allocation7 + $0x18] sm:$0xf] %v338
    %371 = vst [vmem:[#allocation7 + $0x1c] sm:$0xf] %v339
    %372 = vst [vmem:[#allocation7 + $0x20] sm:$0xf] %v340
    %373 = vst [vmem:[#allocation7 + $0x24] sm:$0xf] %v341
    %374 = vst [vmem:[#allocation7 + $0x28] sm:$0xf] %v342
    %375 = vst [vmem:[#allocation7 + $0x2c] sm:$0xf] %v343
    %376 = vst [vmem:[#allocation7 + $0x30] sm:$0xf] %v344
    %377 = vst [vmem:[#allocation7 + $0x34] sm:$0xf] %v345
    %378 = vst [vmem:[#allocation7 + $0x38] sm:$0xf] %v346
    %379 = vst [vmem:[#allocation7 + $0x3c] sm:$0xf] %v347
    %380 = vst [vmem:[#allocation7 + $0x40] sm:$0xf] %v348
    %381 = vst [vmem:[#allocation7 + $0x44] sm:$0xf] %v349
    %382 = vst [vmem:[#allocation7 + $0x48] sm:$0xf] %v350
    %383 = vst [vmem:[#allocation7 + $0x4c] sm:$0xf] %v351
    %384 = vst [vmem:[#allocation7 + $0x50] sm:$0xf] %v352
    %385 = vst [vmem:[#allocation7 + $0x54] sm:$0xf] %v353
    %386 = vst [vmem:[#allocation7 + $0x58] sm:$0xf] %v354
    %387 = vst [vmem:[#allocation7 + $0x5c] sm:$0xf] %v355
    %388 = vst [vmem:[#allocation7 + $0x60] sm:$0xf] %v356
    %389 = vst [vmem:[#allocation7 + $0x64] sm:$0xf] %v357
    %390 = vst [vmem:[#allocation7 + $0x68] sm:$0xf] %v358
    %391 = vst [vmem:[#allocation7 + $0x6c] sm:$0xf] %v359
    %392 = vst [vmem:[#allocation7 + $0x70] sm:$0xf] %v360
    %393 = vst [vmem:[#allocation7 + $0x74] sm:$0xf] %v361
    %394 = vst [vmem:[#allocation7 + $0x78] sm:$0xf] %v362
    %395 = vst [vmem:[#allocation7 + $0x7c] sm:$0xf] %v363
    // Predicated region
    $region22: #{tpu_custom_call.1} parent=1 // pred_check
      _
    $region23: #{tpu_custom_call.1} parent=1 // pred_check_branch
      %397 = sbr.rel (0) target = $region25
    $region24: #{tpu_custom_call.1} parent=1 // pred_region
      %399 = vsyncadd [#allocation4], 0
      %s400 = sshll.u32 [#allocation7], 4
      %s401 = int_to_ptr.vmem [resolvable:$true] %s400
      %s402 = sshll.u32 %s3, 4
      %s403 = int_to_ptr.hbm [resolvable:$true] %s402
      %408 = dma.vmem_to_hbm [thread:$0]  %s401, 2048, %s403, [#allocation4], 64, 64, 4
    $region25: #{tpu_custom_call.1} parent=1 // pred_fallthru
      _
    // Predicated region
    $region26: #{tpu_custom_call.1} parent=1 // pred_check
      _
    $region27: #{tpu_custom_call.1} parent=1 // pred_check_branch
      %410 = sbr.rel (0) target = $region29
    $region28: #{tpu_custom_call.1} parent=1 // pred_region
      %412 = dma.done [#allocation4], 2048
    $region29: #{tpu_custom_call.1} parent=1 // pred_fallthru
      _
    %413 = vsyncpa [#allocation3], 1
    %414 = vsyncpa [#allocation6], 1
    %415 = vsyncpa [#allocation4], 1

</llo_original>
